<compile_context>
chip_gen: v5e
topology: v5e:2x2
jax: 0.10.0
libtpu: 0.0.40
codegen_flags: <defaults>
</compile_context>

<pallas_src>
import jax
import jax.numpy as jnp
from jax.experimental import pallas as pl
from jax.experimental.pallas import tpu as pltpu


def gcn_kernel(adj_ref, ew_ref, x_ref, rrow_ref,
               w1_ref, b1_ref, w2_ref, b2_ref,
               w3_ref, b3_ref, w4_ref, b4_ref,
               out_ref):
    f32 = jnp.float32
    bf16 = jnp.bfloat16

    adj = adj_ref[0]                 # (N, N) bf16: D^-1/2 A D^-1/2 (unweighted)
    adjw = adj * ew_ref[0]           # (N, N) bf16: weighted adjacency, built on the VPU

    # conv1 (in_feats -> h_feats): aggregate-then-transform (cheap N x N matmul at width 7)
    agg = jnp.dot(adjw, x_ref[0], preferred_element_type=f32)              # (N, Fin)
    h = jnp.dot(agg.astype(bf16), w1_ref[...], preferred_element_type=f32)
    h = jnp.maximum(h + b1_ref[...], 0.0)

    # conv2 (h_feats -> h_feats)
    z = jnp.dot(h.astype(bf16), w2_ref[...], preferred_element_type=f32)
    h = jnp.dot(adj, z.astype(bf16), preferred_element_type=f32)
    h = jnp.maximum(h + b2_ref[...], 0.0)

    # conv3 (h_feats -> h_feats)
    z = jnp.dot(h.astype(bf16), w3_ref[...], preferred_element_type=f32)
    h = jnp.dot(adj, z.astype(bf16), preferred_element_type=f32)
    h = jnp.maximum(h + b3_ref[...], 0.0)

    # conv4 (h_feats -> num_classes): transform-then-aggregate (N x N matmul at width 2)
    z = jnp.dot(h.astype(bf16), w4_ref[...], preferred_element_type=f32)
    h = jnp.dot(adj, z.astype(bf16), preferred_element_type=f32) + b4_ref[...]

    # dgl.mean_nodes as a matmul against a per-graph (1/n) row (zero on padded nodes).
    out_ref[0] = jnp.dot(rrow_ref[0].astype(bf16), h.astype(bf16),
                         preferred_element_type=f32)


def gcn_forward(adj_mask, edge_w, x, node_counts, params):
    """Batched GCN forward.

    adj_mask:    (B, N, N) 0/1 with adj_mask[b, dst, src]
    edge_w:      (B, N, N) edge weights (only entries where adj_mask==1 matter)
    x:           (B, N, in_feats) node features
    node_counts: (B,) number of real (non-padded) nodes per graph
    params:      [(w1, b1), ..., (w4, b4)]
    returns:     (B, num_classes) graph-level readout (mean_nodes)
    """
    B, N, in_feats = x.shape
    f32 = jnp.float32
    bf16 = jnp.bfloat16

    # DGL GraphConv norm='both': unweighted degrees, clamped to >= 1.
    out_deg = jnp.clip(jnp.sum(adj_mask, axis=1), 1.0, None)   # per source node
    in_deg = jnp.clip(jnp.sum(adj_mask, axis=2), 1.0, None)    # per destination node
    norm_src = out_deg ** -0.5                                  # (B, N)
    norm_dst = in_deg ** -0.5                                   # (B, N)
    adj_hat = (norm_dst[:, :, None] * adj_mask) * norm_src[:, None, :]

    # Per-graph mean_nodes row: 1/n on real nodes, 0 on padded nodes.
    node_counts = node_counts.astype(f32)
    valid = (jnp.arange(N, dtype=f32)[None, :] < node_counts[:, None]).astype(f32)
    rrow = (valid / node_counts[:, None]).reshape(B, 1, N)

    (w1, b1), (w2, b2), (w3, b3), (w4, b4) = params
    h_feats = w1.shape[1]
    num_classes = w4.shape[1]

    # bf16 MXU operands; f32 biases (bias-add / ReLU stay f32).
    adj_bf = adj_hat.astype(bf16)
    ew_bf = edge_w.astype(bf16)
    x_bf = x.astype(bf16)
    w1, w2, w3, w4 = (w.astype(bf16) for w in (w1, w2, w3, w4))
    b1, b2, b3, b4 = (b.astype(f32) for b in (b1, b2, b3, b4))

    def batched(shape):
        return pl.BlockSpec((1,) + shape, lambda b: (b,) + (0,) * len(shape))

    def shared(shape):
        return pl.BlockSpec(shape, lambda b: (0,) * len(shape))

    out = pl.pallas_call(
        gcn_kernel,
        out_shape=jax.ShapeDtypeStruct((B, 1, num_classes), f32),
        grid=(B,),
        in_specs=[
            batched((N, N)),            # adj_hat
            batched((N, N)),            # edge weights
            batched((N, in_feats)),     # node features
            batched((1, N)),            # mean_nodes readout row
            shared((in_feats, h_feats)), shared((1, h_feats)),
            shared((h_feats, h_feats)), shared((1, h_feats)),
            shared((h_feats, h_feats)), shared((1, h_feats)),
            shared((h_feats, num_classes)), shared((1, num_classes)),
        ],
        out_specs=pl.BlockSpec((1, 1, num_classes), lambda b: (b, 0, 0)),
        compiler_params=pltpu.CompilerParams(
            dimension_semantics=("parallel",)),   # shard graphs across TCs on v7x
    )(adj_bf, ew_bf, x_bf, rrow, w1, b1, w2, b2, w3, b3, w4, b4)

    return out.reshape(B, num_classes)


def gcn_reference(adj_mask, edge_w, x, params):
    """Plain-JAX f32 reference (matches DGL GraphConv norm='both' semantics)."""
    out_deg = jnp.clip(jnp.sum(adj_mask, axis=1), 1.0, None)
    in_deg = jnp.clip(jnp.sum(adj_mask, axis=2), 1.0, None)
    adj_hat = (in_deg[:, :, None] ** -0.5 * adj_mask) * (out_deg[:, None, :] ** -0.5)
    adjw_hat = adj_hat * edge_w  # mask already zeroes non-edges via adj_hat

    (w1, b1), (w2, b2), (w3, b3), (w4, b4) = params
    h = jax.nn.relu(jnp.matmul(adjw_hat, jnp.matmul(x, w1)) + b1)
    h = jax.nn.relu(jnp.matmul(adj_hat, jnp.matmul(h, w2)) + b2)
    h = jax.nn.relu(jnp.matmul(adj_hat, jnp.matmul(h, w3)) + b3)
    h = jnp.matmul(adj_hat, jnp.matmul(h, w4)) + b4
    return jnp.mean(h, axis=1)   # (B, num_classes)


if __name__ == "__main__":
    B, N, in_feats, h_feats, num_classes = 4, 16, 7, 32, 2

    key = jax.random.PRNGKey(0)
    kadj, ke, kx, k1, k2, k3, k4 = jax.random.split(key, 7)

    # Deterministic synthetic batch of graphs: dense 0/1 adjacency + positive edge weights.
    adj_mask = (jax.random.uniform(kadj, (B, N, N)) < 0.3).astype(jnp.float32)
    edge_w = jax.random.uniform(ke, (B, N, N), minval=0.5, maxval=1.5, dtype=jnp.float32)
    x = jax.random.normal(kx, (B, N, in_feats), dtype=jnp.float32)
    node_counts = jnp.full((B,), N, dtype=jnp.int32)   # no padded nodes in this example

    # Glorot-uniform weights, zero biases (like DGL GraphConv defaults).
    def glorot(k, fan_in, fan_out):
        lim = (6.0 / (fan_in + fan_out)) ** 0.5
        return jax.random.uniform(k, (fan_in, fan_out), minval=-lim, maxval=lim,
                                  dtype=jnp.float32)

    params = [
        (glorot(k1, in_feats, h_feats), jnp.zeros((1, h_feats), jnp.float32)),
        (glorot(k2, h_feats, h_feats), jnp.zeros((1, h_feats), jnp.float32)),
        (glorot(k3, h_feats, h_feats), jnp.zeros((1, h_feats), jnp.float32)),
        (glorot(k4, h_feats, num_classes), jnp.zeros((1, num_classes), jnp.float32)),
    ]

    out = gcn_forward(adj_mask, edge_w, x, node_counts, params)
    jax.block_until_ready(out)
    assert out.shape == (B, num_classes), out.shape

    ref = gcn_reference(adj_mask, edge_w, x, params)
    jax.block_until_ready(ref)
    # bf16 MXU operands with f32 accumulation -> loose tolerance vs. f32 reference.
    assert bool(jnp.all(jnp.isfinite(out)))
    assert bool(jnp.allclose(out, ref, atol=5e-2, rtol=5e-2)), (out, ref)

    print("KERNEL_OK")
</pallas_src>

<mosaic_0001>
module attributes {stable_mosaic.version = 11 : i64} {
  func.func @gcn_kernel(%arg0: i32, %arg1: memref<1x16x16xbf16, #tpu.memory_space<vmem>>, %arg2: memref<1x16x16xbf16, #tpu.memory_space<vmem>>, %arg3: memref<1x16x7xbf16, #tpu.memory_space<vmem>>, %arg4: memref<1x1x16xf32, #tpu.memory_space<vmem>>, %arg5: memref<7x32xbf16, #tpu.memory_space<vmem>>, %arg6: memref<1x32xf32, #tpu.memory_space<vmem>>, %arg7: memref<32x32xbf16, #tpu.memory_space<vmem>>, %arg8: memref<1x32xf32, #tpu.memory_space<vmem>>, %arg9: memref<32x32xbf16, #tpu.memory_space<vmem>>, %arg10: memref<1x32xf32, #tpu.memory_space<vmem>>, %arg11: memref<32x2xbf16, #tpu.memory_space<vmem>>, %arg12: memref<1x2xf32, #tpu.memory_space<vmem>>, %arg13: memref<1x1x2xf32, #tpu.memory_space<vmem>>) attributes {dimension_semantics = [#tpu.dimension_semantics<parallel>], iteration_bounds = array<i64: 4>, scalar_prefetch = 0 : i64, scratch_operands = 0 : i64, tpu.core_type = #tpu.core_type<tc>, window_params = [{transform_indices = @transform_0, window_bounds = array<i64: 1, 16, 16>}, {transform_indices = @transform_1, window_bounds = array<i64: 1, 16, 16>}, {transform_indices = @transform_2, window_bounds = array<i64: 1, 16, 7>}, {transform_indices = @transform_3, window_bounds = array<i64: 1, 1, 16>}, {pipeline_mode = #tpu.pipeline_mode<synchronous>, transform_indices = @transform_4, window_bounds = array<i64: 7, 32>}, {pipeline_mode = #tpu.pipeline_mode<synchronous>, transform_indices = @transform_5, window_bounds = array<i64: 1, 32>}, {pipeline_mode = #tpu.pipeline_mode<synchronous>, transform_indices = @transform_6, window_bounds = array<i64: 32, 32>}, {pipeline_mode = #tpu.pipeline_mode<synchronous>, transform_indices = @transform_7, window_bounds = array<i64: 1, 32>}, {pipeline_mode = #tpu.pipeline_mode<synchronous>, transform_indices = @transform_8, window_bounds = array<i64: 32, 32>}, {pipeline_mode = #tpu.pipeline_mode<synchronous>, transform_indices = @transform_9, window_bounds = array<i64: 1, 32>}, {pipeline_mode = #tpu.pipeline_mode<synchronous>, transform_indices = @transform_10, window_bounds = array<i64: 32, 2>}, {pipeline_mode = #tpu.pipeline_mode<synchronous>, transform_indices = @transform_11, window_bounds = array<i64: 1, 2>}, {transform_indices = @transform_12, window_bounds = array<i64: 1, 1, 2>}]} {
    %c0 = arith.constant 0 : index
    %c0_0 = arith.constant 0 : index
    %c0_1 = arith.constant 0 : index
    %0 = vector.load %arg1[%c0, %c0_0, %c0_1] : memref<1x16x16xbf16, #tpu.memory_space<vmem>>, vector<1x16x16xbf16>
    %1 = vector.shape_cast %0 : vector<1x16x16xbf16> to vector<16x16xbf16>
    %c0_2 = arith.constant 0 : index
    %c0_3 = arith.constant 0 : index
    %c0_4 = arith.constant 0 : index
    %2 = vector.load %arg2[%c0_2, %c0_3, %c0_4] : memref<1x16x16xbf16, #tpu.memory_space<vmem>>, vector<1x16x16xbf16>
    %3 = vector.shape_cast %2 : vector<1x16x16xbf16> to vector<16x16xbf16>
    %4 = arith.mulf %1, %3 : vector<16x16xbf16>
    %c0_5 = arith.constant 0 : index
    %c0_6 = arith.constant 0 : index
    %c0_7 = arith.constant 0 : index
    %5 = vector.load %arg3[%c0_5, %c0_6, %c0_7] : memref<1x16x7xbf16, #tpu.memory_space<vmem>>, vector<1x16x7xbf16>
    %6 = vector.shape_cast %5 : vector<1x16x7xbf16> to vector<16x7xbf16>
    %cst = arith.constant dense<0.000000e+00> : vector<16x7xf32>
    %7 = tpu.matmul %4, %6, %cst {dimension_numbers = #tpu.dot_dimension_numbers<[1], [0], [0], [1], [0, 0, 1, 1], [], []>} : vector<16x16xbf16>, vector<16x7xbf16>, vector<16x7xf32> -> vector<16x7xf32>
    %8 = arith.truncf %7 : vector<16x7xf32> to vector<16x7xbf16>
    %c0_8 = arith.constant 0 : index
    %c0_9 = arith.constant 0 : index
    %9 = vector.load %arg5[%c0_8, %c0_9] : memref<7x32xbf16, #tpu.memory_space<vmem>>, vector<7x32xbf16>
    %cst_10 = arith.constant dense<0.000000e+00> : vector<16x32xf32>
    %10 = tpu.matmul %8, %9, %cst_10 {dimension_numbers = #tpu.dot_dimension_numbers<[1], [0], [0], [1], [0, 0, 1, 1], [], []>} : vector<16x7xbf16>, vector<7x32xbf16>, vector<16x32xf32> -> vector<16x32xf32>
    %c0_11 = arith.constant 0 : index
    %c0_12 = arith.constant 0 : index
    %11 = vector.load %arg6[%c0_11, %c0_12] : memref<1x32xf32, #tpu.memory_space<vmem>>, vector<1x32xf32>
    %12 = vector.broadcast %11 : vector<1x32xf32> to vector<16x32xf32>
    %13 = arith.addf %10, %12 : vector<16x32xf32>
    %cst_13 = arith.constant 0.000000e+00 : f32
    %14 = vector.broadcast %cst_13 : f32 to vector<16x32xf32>
    %15 = arith.maximumf %13, %14 : vector<16x32xf32>
    %16 = arith.truncf %15 : vector<16x32xf32> to vector<16x32xbf16>
    %c0_14 = arith.constant 0 : index
    %c0_15 = arith.constant 0 : index
    %17 = vector.load %arg7[%c0_14, %c0_15] : memref<32x32xbf16, #tpu.memory_space<vmem>>, vector<32x32xbf16>
    %cst_16 = arith.constant dense<0.000000e+00> : vector<16x32xf32>
    %18 = tpu.matmul %16, %17, %cst_16 {dimension_numbers = #tpu.dot_dimension_numbers<[1], [0], [0], [1], [0, 0, 1, 1], [], []>} : vector<16x32xbf16>, vector<32x32xbf16>, vector<16x32xf32> -> vector<16x32xf32>
    %19 = arith.truncf %18 : vector<16x32xf32> to vector<16x32xbf16>
    %cst_17 = arith.constant dense<0.000000e+00> : vector<16x32xf32>
    %20 = tpu.matmul %1, %19, %cst_17 {dimension_numbers = #tpu.dot_dimension_numbers<[1], [0], [0], [1], [0, 0, 1, 1], [], []>} : vector<16x16xbf16>, vector<16x32xbf16>, vector<16x32xf32> -> vector<16x32xf32>
    %c0_18 = arith.constant 0 : index
    %c0_19 = arith.constant 0 : index
    %21 = vector.load %arg8[%c0_18, %c0_19] : memref<1x32xf32, #tpu.memory_space<vmem>>, vector<1x32xf32>
    %22 = vector.broadcast %21 : vector<1x32xf32> to vector<16x32xf32>
    %23 = arith.addf %20, %22 : vector<16x32xf32>
    %cst_20 = arith.constant 0.000000e+00 : f32
    %24 = vector.broadcast %cst_20 : f32 to vector<16x32xf32>
    %25 = arith.maximumf %23, %24 : vector<16x32xf32>
    %26 = arith.truncf %25 : vector<16x32xf32> to vector<16x32xbf16>
    %c0_21 = arith.constant 0 : index
    %c0_22 = arith.constant 0 : index
    %27 = vector.load %arg9[%c0_21, %c0_22] : memref<32x32xbf16, #tpu.memory_space<vmem>>, vector<32x32xbf16>
    %cst_23 = arith.constant dense<0.000000e+00> : vector<16x32xf32>
    %28 = tpu.matmul %26, %27, %cst_23 {dimension_numbers = #tpu.dot_dimension_numbers<[1], [0], [0], [1], [0, 0, 1, 1], [], []>} : vector<16x32xbf16>, vector<32x32xbf16>, vector<16x32xf32> -> vector<16x32xf32>
    %29 = arith.truncf %28 : vector<16x32xf32> to vector<16x32xbf16>
    %cst_24 = arith.constant dense<0.000000e+00> : vector<16x32xf32>
    %30 = tpu.matmul %1, %29, %cst_24 {dimension_numbers = #tpu.dot_dimension_numbers<[1], [0], [0], [1], [0, 0, 1, 1], [], []>} : vector<16x16xbf16>, vector<16x32xbf16>, vector<16x32xf32> -> vector<16x32xf32>
    %c0_25 = arith.constant 0 : index
    %c0_26 = arith.constant 0 : index
    %31 = vector.load %arg10[%c0_25, %c0_26] : memref<1x32xf32, #tpu.memory_space<vmem>>, vector<1x32xf32>
    %32 = vector.broadcast %31 : vector<1x32xf32> to vector<16x32xf32>
    %33 = arith.addf %30, %32 : vector<16x32xf32>
    %cst_27 = arith.constant 0.000000e+00 : f32
    %34 = vector.broadcast %cst_27 : f32 to vector<16x32xf32>
    %35 = arith.maximumf %33, %34 : vector<16x32xf32>
    %36 = arith.truncf %35 : vector<16x32xf32> to vector<16x32xbf16>
    %c0_28 = arith.constant 0 : index
    %c0_29 = arith.constant 0 : index
    %37 = vector.load %arg11[%c0_28, %c0_29] : memref<32x2xbf16, #tpu.memory_space<vmem>>, vector<32x2xbf16>
    %cst_30 = arith.constant dense<0.000000e+00> : vector<16x2xf32>
    %38 = tpu.matmul %36, %37, %cst_30 {dimension_numbers = #tpu.dot_dimension_numbers<[1], [0], [0], [1], [0, 0, 1, 1], [], []>} : vector<16x32xbf16>, vector<32x2xbf16>, vector<16x2xf32> -> vector<16x2xf32>
    %39 = arith.truncf %38 : vector<16x2xf32> to vector<16x2xbf16>
    %cst_31 = arith.constant dense<0.000000e+00> : vector<16x2xf32>
    %40 = tpu.matmul %1, %39, %cst_31 {dimension_numbers = #tpu.dot_dimension_numbers<[1], [0], [0], [1], [0, 0, 1, 1], [], []>} : vector<16x16xbf16>, vector<16x2xbf16>, vector<16x2xf32> -> vector<16x2xf32>
    %c0_32 = arith.constant 0 : index
    %c0_33 = arith.constant 0 : index
    %41 = vector.load %arg12[%c0_32, %c0_33] : memref<1x2xf32, #tpu.memory_space<vmem>>, vector<1x2xf32>
    %42 = vector.broadcast %41 : vector<1x2xf32> to vector<16x2xf32>
    %43 = arith.addf %40, %42 : vector<16x2xf32>
    %c0_34 = arith.constant 0 : index
    %c0_35 = arith.constant 0 : index
    %c0_36 = arith.constant 0 : index
    %44 = vector.load %arg4[%c0_34, %c0_35, %c0_36] : memref<1x1x16xf32, #tpu.memory_space<vmem>>, vector<1x1x16xf32>
    %45 = vector.shape_cast %44 : vector<1x1x16xf32> to vector<1x16xf32>
    %46 = arith.truncf %45 : vector<1x16xf32> to vector<1x16xbf16>
    %47 = arith.truncf %43 : vector<16x2xf32> to vector<16x2xbf16>
    %cst_37 = arith.constant dense<0.000000e+00> : vector<1x2xf32>
    %48 = tpu.matmul %46, %47, %cst_37 {dimension_numbers = #tpu.dot_dimension_numbers<[1], [0], [0], [1], [0, 0, 1, 1], [], []>} : vector<1x16xbf16>, vector<16x2xbf16>, vector<1x2xf32> -> vector<1x2xf32>
    %c0_38 = arith.constant 0 : index
    %c0_39 = arith.constant 0 : index
    %c0_40 = arith.constant 0 : index
    %49 = vector.load %arg13[%c0_38, %c0_39, %c0_40] : memref<1x1x2xf32, #tpu.memory_space<vmem>>, vector<1x1x2xf32>
    %50 = vector.shape_cast %49 : vector<1x1x2xf32> to vector<1x2xf32>
    %51 = vector.shape_cast %48 : vector<1x2xf32> to vector<1x1x2xf32>
    tpu.vector_store %arg13[%c0_38, %c0_39, %c0_40], %51 {strides = array<i32>} : memref<1x1x2xf32, #tpu.memory_space<vmem>>, vector<1x1x2xf32>,
    return
  }
  func.func @transform_0(%arg0: i32) -> (i32, i32, i32) {
    %c0_i32 = arith.constant 0 : i32
    %c0_i32_0 = arith.constant 0 : i32
    %c0_i32_1 = arith.constant 0 : i32
    return %arg0, %c0_i32, %c0_i32_0 : i32, i32, i32
  }
  func.func @transform_1(%arg0: i32) -> (i32, i32, i32) {
    %c0_i32 = arith.constant 0 : i32
    %c0_i32_0 = arith.constant 0 : i32
    %c0_i32_1 = arith.constant 0 : i32
    return %arg0, %c0_i32, %c0_i32_0 : i32, i32, i32
  }
  func.func @transform_2(%arg0: i32) -> (i32, i32, i32) {
    %c0_i32 = arith.constant 0 : i32
    %c0_i32_0 = arith.constant 0 : i32
    %c0_i32_1 = arith.constant 0 : i32
    return %arg0, %c0_i32, %c0_i32_0 : i32, i32, i32
  }
  func.func @transform_3(%arg0: i32) -> (i32, i32, i32) {
    %c0_i32 = arith.constant 0 : i32
    %c0_i32_0 = arith.constant 0 : i32
    %c0_i32_1 = arith.constant 0 : i32
    return %arg0, %c0_i32, %c0_i32_0 : i32, i32, i32
  }
  func.func @transform_4(%arg0: i32) -> (i32, i32) {
    %c0_i32 = arith.constant 0 : i32
    %c0_i32_0 = arith.constant 0 : i32
    %c0_i32_1 = arith.constant 0 : i32
    return %c0_i32, %c0_i32_0 : i32, i32
  }
  func.func @transform_5(%arg0: i32) -> (i32, i32) {
    %c0_i32 = arith.constant 0 : i32
    %c0_i32_0 = arith.constant 0 : i32
    %c0_i32_1 = arith.constant 0 : i32
    return %c0_i32, %c0_i32_0 : i32, i32
  }
  func.func @transform_6(%arg0: i32) -> (i32, i32) {
    %c0_i32 = arith.constant 0 : i32
    %c0_i32_0 = arith.constant 0 : i32
    %c0_i32_1 = arith.constant 0 : i32
    return %c0_i32, %c0_i32_0 : i32, i32
  }
  func.func @transform_7(%arg0: i32) -> (i32, i32) {
    %c0_i32 = arith.constant 0 : i32
    %c0_i32_0 = arith.constant 0 : i32
    %c0_i32_1 = arith.constant 0 : i32
    return %c0_i32, %c0_i32_0 : i32, i32
  }
  func.func @transform_8(%arg0: i32) -> (i32, i32) {
    %c0_i32 = arith.constant 0 : i32
    %c0_i32_0 = arith.constant 0 : i32
    %c0_i32_1 = arith.constant 0 : i32
    return %c0_i32, %c0_i32_0 : i32, i32
  }
  func.func @transform_9(%arg0: i32) -> (i32, i32) {
    %c0_i32 = arith.constant 0 : i32
    %c0_i32_0 = arith.constant 0 : i32
    %c0_i32_1 = arith.constant 0 : i32
    return %c0_i32, %c0_i32_0 : i32, i32
  }
  func.func @transform_10(%arg0: i32) -> (i32, i32) {
    %c0_i32 = arith.constant 0 : i32
    %c0_i32_0 = arith.constant 0 : i32
    %c0_i32_1 = arith.constant 0 : i32
    return %c0_i32, %c0_i32_0 : i32, i32
  }
  func.func @transform_11(%arg0: i32) -> (i32, i32) {
    %c0_i32 = arith.constant 0 : i32
    %c0_i32_0 = arith.constant 0 : i32
    %c0_i32_1 = arith.constant 0 : i32
    return %c0_i32, %c0_i32_0 : i32, i32
  }
  func.func @transform_12(%arg0: i32) -> (i32, i32, i32) {
    %c0_i32 = arith.constant 0 : i32
    %c0_i32_0 = arith.constant 0 : i32
    %c0_i32_1 = arith.constant 0 : i32
    return %arg0, %c0_i32, %c0_i32_0 : i32, i32, i32
  }
}

</mosaic_0001>

<llo_original>
// kernel: tpu_custom_call.1
$region0: #{tpu_custom_call.1}
  #allocation0 [shape = 'u32[]', space=smem, size = 0x4, offset = 0x4, fixed_abs, tag = 'smem constant byte address 0x4 - core index']
  #allocation1 [shape = 'u32[72,128]{1,0:T(1,128)}', space=vmem, size = 0x9000, scoped, tag = 'internal scratch']
  %s0 = inlined_call_operand.vmem [shape: bf16[4,16,16], index: 0, kind: input, shape index: {}]
  %s1 = inlined_call_operand.hbm [shape: bf16[4,16,16], index: 1, kind: input, shape index: {}]
  %s2 = inlined_call_operand.vmem [shape: bf16[4,16,7], index: 2, kind: input, shape index: {}]
  %s3 = inlined_call_operand.hbm [shape: f32[4,1,16], index: 3, kind: input, shape index: {}]
  %s4 = inlined_call_operand.hbm [shape: bf16[7,32], index: 4, kind: input, shape index: {}]
  %s5 = inlined_call_operand.vmem [shape: f32[1,32], index: 5, kind: input, shape index: {}]
  %s6 = inlined_call_operand.vmem [shape: bf16[32,32], index: 6, kind: input, shape index: {}]
  %s7 = inlined_call_operand.vmem [shape: f32[1,32], index: 7, kind: input, shape index: {}]
  %s8 = inlined_call_operand.hbm [shape: bf16[32,32], index: 8, kind: input, shape index: {}]
  %s9 = inlined_call_operand.vmem [shape: f32[1,32], index: 9, kind: input, shape index: {}]
  %s10 = inlined_call_operand.vmem [shape: bf16[32,2], index: 10, kind: input, shape index: {}]
  %s11 = inlined_call_operand.vmem [shape: f32[1,2], index: 11, kind: input, shape index: {}]
  %s12 = inlined_call_operand.vmem [shape: f32[4,1,2], index: 12, kind: output, shape index: {}]
  %s13 = sld [smem:[#allocation0]]
  $region97: #{tpu_custom_call.1} parent=0
    _
  %s15 = ssub.s32 1, %s13
  %s16 = scalar_select 0, %s15, %s13
  $region1: #{tpu_custom_call.1} parent=0
    #allocation2 [shape = 'u8[8192]{0}', space=vmem, size = 0x2000, scoped, tag = 'input window, operand 1']
    #allocation3 [shape = 's32[2]{0}', space=sflag, size = 0x8, scoped, tag = 'scoped memory for tpu_custom_call.1']
    #allocation4 [shape = 'u8[1024]{0}', space=vmem, size = 0x400, scoped, tag = 'input window, operand 3']
    #allocation5 [shape = 's32[2]{0}', space=sflag, size = 0x8, scoped, tag = 'scoped memory for tpu_custom_call.1']
    #allocation6 [shape = 'u8[2048]{0}', space=vmem, size = 0x800, scoped, tag = 'input window, operand 4, single buffered']
    #allocation7 [shape = 'u8[8192]{0}', space=vmem, size = 0x2000, scoped, tag = 'input window, operand 8, single buffered']
    #allocation8 [shape = 's32[1]{0}', space=sflag, size = 0x4, scoped, tag = 'scoped memory for tpu_custom_call.1']
    %17 = vsyncpa [#allocation3], 0
    %s18 = scalar_lea.sflag [#allocation3], 1
    %19 = vsyncpa %s18, 0
    %20 = vsyncpa [#allocation5], 0
    %s21 = scalar_lea.sflag [#allocation5], 1
    %22 = vsyncpa %s21, 0
    %23 = vsyncpa [#allocation8], 0
    loop: start=0, step=1, limit=6
    $region2: #{tpu_custom_call.1} parent=1 // loop_pre_header
      _
    $region3: #{tpu_custom_call.1} parent=1 // loop_header
      %s25 = sphi 0, %s29
      %p26 = scmp.ge.s32.totalorder %s25, 6
      %s35 = sphi 0, %s37
      %s38 = sphi 0, %s35
      %s39 = sphi 0, %s38
      %s55 = sphi 0, %s39
      %s61 = sphi 0, %s63
      %s64 = sphi 0, %s61
      %s65 = sphi 0, %s64
      %s81 = sphi 0, %s65
      %s87 = sphi 0, %s89
      %s90 = sphi 0, %s87
      %s91 = sphi 0, %s90
      %s107 = sphi 0, %s91
      %s113 = sphi 0, %s115
      %s116 = sphi 0, %s113
      %s117 = sphi 0, %s116
      %s133 = sphi 0, %s117
      %s137 = sphi 0, %s137
      %s139 = sphi 0, %s137
      %s140 = sphi 0, %s139
      %s154 = sphi 0, %s140
      %s158 = sphi 0, %s158
      %s160 = sphi 0, %s158
      %s161 = sphi 0, %s160
      %s175 = sphi 0, %s161
      %s179 = sphi 0, %s179
      %s181 = sphi 0, %s179
      %s182 = sphi 0, %s181
      %s196 = sphi 0, %s182
      %s200 = sphi 0, %s200
      %s202 = sphi 0, %s200
      %s203 = sphi 0, %s202
      %s217 = sphi 0, %s203
      %s221 = sphi 0, %s221
      %s223 = sphi 0, %s221
      %s224 = sphi 0, %s223
      %s238 = sphi 0, %s224
      %s242 = sphi 0, %s242
      %s244 = sphi 0, %s242
      %s245 = sphi 0, %s244
      %s259 = sphi 0, %s245
      %s263 = sphi 0, %s263
      %s265 = sphi 0, %s263
      %s266 = sphi 0, %s265
      %s280 = sphi 0, %s266
      %s284 = sphi 0, %s284
      %s286 = sphi 0, %s284
      %s287 = sphi 0, %s286
      %s301 = sphi 0, %s287
      %s307 = sphi 0, %s309
      %s310 = sphi 0, %s307
      %s311 = sphi 0, %s310
      %s327 = sphi 0, %s311
    $region4: #{tpu_custom_call.1} parent=1 // loop_header_branch
      %28 = sbr.rel (%p26) target = $region8
    $region5: #{tpu_custom_call.1} parent=1 // loop_body
      %s30 = ssub.s32 %s25, 1
      %s31 = ssub.s32 %s25, 2
      %s32 = sadd.s32 %s25, 1
      %s33 = ssub.s32 %s25, %s32
      %p34 = scmp.eq.s32.totalorder %s33, 0
      %s36 = sadd.s32 %s35, 1
      %s37 = scalar_select %p34, %s35, %s36
      %p40 = pneg %p34
      %p41 = scmp.eq.s32.totalorder %s25, 3
      %p42 = por %p40, %p41
      %p43 = scmp.ne.s32.totalorder %s35, %s38
      %p44 = scmp.eq.s32.totalorder %s25, 0
      %p45 = por %p43, %p44
      %p46 = scmp.ne.s32.totalorder %s35, %s38
      %p47 = scmp.eq.s32.totalorder %s30, 3
      %p48 = por %p46, %p47
      %p49 = scmp.ne.s32.totalorder %s38, %s39
      %p50 = scmp.eq.s32.totalorder %s30, 0
      %p51 = por %p49, %p50
      %p52 = scmp.ne.s32.totalorder %s38, %s39
      %p53 = scmp.eq.s32.totalorder %s31, 3
      %p54 = por %p52, %p53
      %p56 = scmp.ne.s32.totalorder %s39, %s55
      %p57 = scmp.eq.s32.totalorder %s31, 0
      %p58 = por %p56, %p57
      %s59 = ssub.s32 %s25, %s32
      %p60 = scmp.eq.s32.totalorder %s59, 0
      %s62 = sadd.s32 %s61, 1
      %s63 = scalar_select %p60, %s61, %s62
      %p66 = pneg %p60
      %p67 = scmp.eq.s32.totalorder %s25, 3
      %p68 = por %p66, %p67
      %p69 = scmp.ne.s32.totalorder %s61, %s64
      %p70 = scmp.eq.s32.totalorder %s25, 0
      %p71 = por %p69, %p70
      %p72 = scmp.ne.s32.totalorder %s61, %s64
      %p73 = scmp.eq.s32.totalorder %s30, 3
      %p74 = por %p72, %p73
      %p75 = scmp.ne.s32.totalorder %s64, %s65
      %p76 = scmp.eq.s32.totalorder %s30, 0
      %p77 = por %p75, %p76
      %p78 = scmp.ne.s32.totalorder %s64, %s65
      %p79 = scmp.eq.s32.totalorder %s31, 3
      %p80 = por %p78, %p79
      %p82 = scmp.ne.s32.totalorder %s65, %s81
      %p83 = scmp.eq.s32.totalorder %s31, 0
      %p84 = por %p82, %p83
      %s85 = ssub.s32 %s25, %s32
      %p86 = scmp.eq.s32.totalorder %s85, 0
      %s88 = sadd.s32 %s87, 1
      %s89 = scalar_select %p86, %s87, %s88
      %p92 = pneg %p86
      %p93 = scmp.eq.s32.totalorder %s25, 3
      %p94 = por %p92, %p93
      %p95 = scmp.ne.s32.totalorder %s87, %s90
      %p96 = scmp.eq.s32.totalorder %s25, 0
      %p97 = por %p95, %p96
      %p98 = scmp.ne.s32.totalorder %s87, %s90
      %p99 = scmp.eq.s32.totalorder %s30, 3
      %p100 = por %p98, %p99
      %p101 = scmp.ne.s32.totalorder %s90, %s91
      %p102 = scmp.eq.s32.totalorder %s30, 0
      %p103 = por %p101, %p102
      %p104 = scmp.ne.s32.totalorder %s90, %s91
      %p105 = scmp.eq.s32.totalorder %s31, 3
      %p106 = por %p104, %p105
      %p108 = scmp.ne.s32.totalorder %s91, %s107
      %p109 = scmp.eq.s32.totalorder %s31, 0
      %p110 = por %p108, %p109
      %s111 = ssub.s32 %s25, %s32
      %p112 = scmp.eq.s32.totalorder %s111, 0
      %s114 = sadd.s32 %s113, 1
      %s115 = scalar_select %p112, %s113, %s114
      %p118 = pneg %p112
      %p119 = scmp.eq.s32.totalorder %s25, 3
      %p120 = por %p118, %p119
      %p121 = scmp.ne.s32.totalorder %s113, %s116
      %p122 = scmp.eq.s32.totalorder %s25, 0
      %p123 = por %p121, %p122
      %p124 = scmp.ne.s32.totalorder %s113, %s116
      %p125 = scmp.eq.s32.totalorder %s30, 3
      %p126 = por %p124, %p125
      %p127 = scmp.ne.s32.totalorder %s116, %s117
      %p128 = scmp.eq.s32.totalorder %s30, 0
      %p129 = por %p127, %p128
      %p130 = scmp.ne.s32.totalorder %s116, %s117
      %p131 = scmp.eq.s32.totalorder %s31, 3
      %p132 = por %p130, %p131
      %p134 = scmp.ne.s32.totalorder %s117, %s133
      %p135 = scmp.eq.s32.totalorder %s31, 0
      %p136 = por %p134, %p135
      %s138 = sadd.s32 %s137, 1
      %p141 = scmp.eq.s32.totalorder %s25, 3
      %p142 = scmp.ne.s32.totalorder %s137, %s139
      %p143 = scmp.eq.s32.totalorder %s25, 0
      %p144 = por %p142, %p143
      %p145 = scmp.ne.s32.totalorder %s137, %s139
      %p146 = scmp.eq.s32.totalorder %s30, 3
      %p147 = por %p145, %p146
      %p148 = scmp.ne.s32.totalorder %s139, %s140
      %p149 = scmp.eq.s32.totalorder %s30, 0
      %p150 = por %p148, %p149
      %p151 = scmp.ne.s32.totalorder %s139, %s140
      %p152 = scmp.eq.s32.totalorder %s31, 3
      %p153 = por %p151, %p152
      %p155 = scmp.ne.s32.totalorder %s140, %s154
      %p156 = scmp.eq.s32.totalorder %s31, 0
      %p157 = por %p155, %p156
      %s159 = sadd.s32 %s158, 1
      %p162 = scmp.eq.s32.totalorder %s25, 3
      %p163 = scmp.ne.s32.totalorder %s158, %s160
      %p164 = scmp.eq.s32.totalorder %s25, 0
      %p165 = por %p163, %p164
      %p166 = scmp.ne.s32.totalorder %s158, %s160
      %p167 = scmp.eq.s32.totalorder %s30, 3
      %p168 = por %p166, %p167
      %p169 = scmp.ne.s32.totalorder %s160, %s161
      %p170 = scmp.eq.s32.totalorder %s30, 0
      %p171 = por %p169, %p170
      %p172 = scmp.ne.s32.totalorder %s160, %s161
      %p173 = scmp.eq.s32.totalorder %s31, 3
      %p174 = por %p172, %p173
      %p176 = scmp.ne.s32.totalorder %s161, %s175
      %p177 = scmp.eq.s32.totalorder %s31, 0
      %p178 = por %p176, %p177
      %s180 = sadd.s32 %s179, 1
      %p183 = scmp.eq.s32.totalorder %s25, 3
      %p184 = scmp.ne.s32.totalorder %s179, %s181
      %p185 = scmp.eq.s32.totalorder %s25, 0
      %p186 = por %p184, %p185
      %p187 = scmp.ne.s32.totalorder %s179, %s181
      %p188 = scmp.eq.s32.totalorder %s30, 3
      %p189 = por %p187, %p188
      %p190 = scmp.ne.s32.totalorder %s181, %s182
      %p191 = scmp.eq.s32.totalorder %s30, 0
      %p192 = por %p190, %p191
      %p193 = scmp.ne.s32.totalorder %s181, %s182
      %p194 = scmp.eq.s32.totalorder %s31, 3
      %p195 = por %p193, %p194
      %p197 = scmp.ne.s32.totalorder %s182, %s196
      %p198 = scmp.eq.s32.totalorder %s31, 0
      %p199 = por %p197, %p198
      %s201 = sadd.s32 %s200, 1
      %p204 = scmp.eq.s32.totalorder %s25, 3
      %p205 = scmp.ne.s32.totalorder %s200, %s202
      %p206 = scmp.eq.s32.totalorder %s25, 0
      %p207 = por %p205, %p206
      %p208 = scmp.ne.s32.totalorder %s200, %s202
      %p209 = scmp.eq.s32.totalorder %s30, 3
      %p210 = por %p208, %p209
      %p211 = scmp.ne.s32.totalorder %s202, %s203
      %p212 = scmp.eq.s32.totalorder %s30, 0
      %p213 = por %p211, %p212
      %p214 = scmp.ne.s32.totalorder %s202, %s203
      %p215 = scmp.eq.s32.totalorder %s31, 3
      %p216 = por %p214, %p215
      %p218 = scmp.ne.s32.totalorder %s203, %s217
      %p219 = scmp.eq.s32.totalorder %s31, 0
      %p220 = por %p218, %p219
      %s222 = sadd.s32 %s221, 1
      %p225 = scmp.eq.s32.totalorder %s25, 3
      %p226 = scmp.ne.s32.totalorder %s221, %s223
      %p227 = scmp.eq.s32.totalorder %s25, 0
      %p228 = por %p226, %p227
      %p229 = scmp.ne.s32.totalorder %s221, %s223
      %p230 = scmp.eq.s32.totalorder %s30, 3
      %p231 = por %p229, %p230
      %p232 = scmp.ne.s32.totalorder %s223, %s224
      %p233 = scmp.eq.s32.totalorder %s30, 0
      %p234 = por %p232, %p233
      %p235 = scmp.ne.s32.totalorder %s223, %s224
      %p236 = scmp.eq.s32.totalorder %s31, 3
      %p237 = por %p235, %p236
      %p239 = scmp.ne.s32.totalorder %s224, %s238
      %p240 = scmp.eq.s32.totalorder %s31, 0
      %p241 = por %p239, %p240
      %s243 = sadd.s32 %s242, 1
      %p246 = scmp.eq.s32.totalorder %s25, 3
      %p247 = scmp.ne.s32.totalorder %s242, %s244
      %p248 = scmp.eq.s32.totalorder %s25, 0
      %p249 = por %p247, %p248
      %p250 = scmp.ne.s32.totalorder %s242, %s244
      %p251 = scmp.eq.s32.totalorder %s30, 3
      %p252 = por %p250, %p251
      %p253 = scmp.ne.s32.totalorder %s244, %s245
      %p254 = scmp.eq.s32.totalorder %s30, 0
      %p255 = por %p253, %p254
      %p256 = scmp.ne.s32.totalorder %s244, %s245
      %p257 = scmp.eq.s32.totalorder %s31, 3
      %p258 = por %p256, %p257
      %p260 = scmp.ne.s32.totalorder %s245, %s259
      %p261 = scmp.eq.s32.totalorder %s31, 0
      %p262 = por %p260, %p261
      %s264 = sadd.s32 %s263, 1
      %p267 = scmp.eq.s32.totalorder %s25, 3
      %p268 = scmp.ne.s32.totalorder %s263, %s265
      %p269 = scmp.eq.s32.totalorder %s25, 0
      %p270 = por %p268, %p269
      %p271 = scmp.ne.s32.totalorder %s263, %s265
      %p272 = scmp.eq.s32.totalorder %s30, 3
      %p273 = por %p271, %p272
      %p274 = scmp.ne.s32.totalorder %s265, %s266
      %p275 = scmp.eq.s32.totalorder %s30, 0
      %p276 = por %p274, %p275
      %p277 = scmp.ne.s32.totalorder %s265, %s266
      %p278 = scmp.eq.s32.totalorder %s31, 3
      %p279 = por %p277, %p278
      %p281 = scmp.ne.s32.totalorder %s266, %s280
      %p282 = scmp.eq.s32.totalorder %s31, 0
      %p283 = por %p281, %p282
      %s285 = sadd.s32 %s284, 1
      %p288 = scmp.eq.s32.totalorder %s25, 3
      %p289 = scmp.ne.s32.totalorder %s284, %s286
      %p290 = scmp.eq.s32.totalorder %s25, 0
      %p291 = por %p289, %p290
      %p292 = scmp.ne.s32.totalorder %s284, %s286
      %p293 = scmp.eq.s32.totalorder %s30, 3
      %p294 = por %p292, %p293
      %p295 = scmp.ne.s32.totalorder %s286, %s287
      %p296 = scmp.eq.s32.totalorder %s30, 0
      %p297 = por %p295, %p296
      %p298 = scmp.ne.s32.totalorder %s286, %s287
      %p299 = scmp.eq.s32.totalorder %s31, 3
      %p300 = por %p298, %p299
      %p302 = scmp.ne.s32.totalorder %s287, %s301
      %p303 = scmp.eq.s32.totalorder %s31, 0
      %p304 = por %p302, %p303
      %s305 = ssub.s32 %s25, %s32
      %p306 = scmp.eq.s32.totalorder %s305, 0
      %s308 = sadd.s32 %s307, 1
      %s309 = scalar_select %p306, %s307, %s308
      %p312 = pneg %p306
      %p313 = scmp.eq.s32.totalorder %s25, 3
      %p314 = por %p312, %p313
      %p315 = scmp.ne.s32.totalorder %s307, %s310
      %p316 = scmp.eq.s32.totalorder %s25, 0
      %p317 = por %p315, %p316
      %p318 = scmp.ne.s32.totalorder %s307, %s310
      %p319 = scmp.eq.s32.totalorder %s30, 3
      %p320 = por %p318, %p319
      %p321 = scmp.ne.s32.totalorder %s310, %s311
      %p322 = scmp.eq.s32.totalorder %s30, 0
      %p323 = por %p321, %p322
      %p324 = scmp.ne.s32.totalorder %s310, %s311
      %p325 = scmp.eq.s32.totalorder %s31, 3
      %p326 = por %p324, %p325
      %p328 = scmp.ne.s32.totalorder %s311, %s327
      %p329 = scmp.eq.s32.totalorder %s31, 0
      %p330 = por %p328, %p329
      %p331 = scmp.le.s32.totalorder 1, %s25
      %p332 = scmp.lt.s32.totalorder %s25, 5
      %p333 = pnand %p331, %p332
      %p334 = pneg %p333
      // Predicated region
      $region9: #{tpu_custom_call.1} parent=5 // pred_check
        _
      $region10: #{tpu_custom_call.1} parent=5 // pred_check_branch
        %336 = sbr.rel (%p333) target = $region12
      $region11: #{tpu_custom_call.1} parent=5 // pred_region
        %s337 = ssub.s32 %s25, 1
        // Predicated region
        $region13: #{tpu_custom_call.1} parent=11 // pred_check
          %p338 = pneg %p150
        $region14: #{tpu_custom_call.1} parent=11 // pred_check_branch
          %340 = sbr.rel (%p338) target = $region16
        $region15: #{tpu_custom_call.1} parent=11 // pred_region
          %342 = vsyncadd [#allocation5], 0
          %s344 = sshll.u32 %s4, 4
          %s345 = int_to_ptr.hbm [resolvable:$true] %s344
          %s346 = sshll.u32 [#allocation6], 4
          %s347 = int_to_ptr.vmem [resolvable:$true] %s346
          %349 = dma.hbm_to_vmem [thread:$0]  %s345, 64, %s347, [#allocation5]
        $region16: #{tpu_custom_call.1} parent=11 // pred_fallthru
          _
        // Predicated region
        $region17: #{tpu_custom_call.1} parent=11 // pred_check
          %p350 = pneg %p171
        $region18: #{tpu_custom_call.1} parent=11 // pred_check_branch
          %352 = sbr.rel (%p350) target = $region20
        $region19: #{tpu_custom_call.1} parent=11 // pred_region
          _
        $region20: #{tpu_custom_call.1} parent=11 // pred_fallthru
          _
        // Predicated region
        $region21: #{tpu_custom_call.1} parent=11 // pred_check
          %p353 = pneg %p192
        $region22: #{tpu_custom_call.1} parent=11 // pred_check_branch
          %355 = sbr.rel (%p353) target = $region24
        $region23: #{tpu_custom_call.1} parent=11 // pred_region
          _
        $region24: #{tpu_custom_call.1} parent=11 // pred_fallthru
          _
        // Predicated region
        $region25: #{tpu_custom_call.1} parent=11 // pred_check
          %p356 = pneg %p213
        $region26: #{tpu_custom_call.1} parent=11 // pred_check_branch
          %358 = sbr.rel (%p356) target = $region28
        $region27: #{tpu_custom_call.1} parent=11 // pred_region
          _
        $region28: #{tpu_custom_call.1} parent=11 // pred_fallthru
          _
        // Predicated region
        $region29: #{tpu_custom_call.1} parent=11 // pred_check
          %p359 = pneg %p234
        $region30: #{tpu_custom_call.1} parent=11 // pred_check_branch
          %361 = sbr.rel (%p359) target = $region32
        $region31: #{tpu_custom_call.1} parent=11 // pred_region
          %363 = vsyncadd [#allocation8], 0
          %s364 = sshll.u32 %s8, 4
          %s365 = int_to_ptr.hbm [resolvable:$true] %s364
          %s366 = sshll.u32 [#allocation7], 4
          %s367 = int_to_ptr.vmem [resolvable:$true] %s366
          %372 = dma.hbm_to_vmem [thread:$0]  %s365, 256, %s367, [#allocation8], 64, 64, 4
        $region32: #{tpu_custom_call.1} parent=11 // pred_fallthru
          _
        // Predicated region
        $region33: #{tpu_custom_call.1} parent=11 // pred_check
          %p373 = pneg %p255
        $region34: #{tpu_custom_call.1} parent=11 // pred_check_branch
          %375 = sbr.rel (%p373) target = $region36
        $region35: #{tpu_custom_call.1} parent=11 // pred_region
          _
        $region36: #{tpu_custom_call.1} parent=11 // pred_fallthru
          _
        // Predicated region
        $region37: #{tpu_custom_call.1} parent=11 // pred_check
          %p376 = pneg %p276
        $region38: #{tpu_custom_call.1} parent=11 // pred_check_branch
          %378 = sbr.rel (%p376) target = $region40
        $region39: #{tpu_custom_call.1} parent=11 // pred_region
          _
        $region40: #{tpu_custom_call.1} parent=11 // pred_fallthru
          _
        // Predicated region
        $region41: #{tpu_custom_call.1} parent=11 // pred_check
          %p379 = pneg %p297
        $region42: #{tpu_custom_call.1} parent=11 // pred_check_branch
          %381 = sbr.rel (%p379) target = $region44
        $region43: #{tpu_custom_call.1} parent=11 // pred_region
          _
        $region44: #{tpu_custom_call.1} parent=11 // pred_fallthru
          _
      $region12: #{tpu_custom_call.1} parent=5 // pred_fallthru
        _
      %p382 = scmp.lt.s32.totalorder %s25, 4
      // Predicated region
      $region45: #{tpu_custom_call.1} parent=5 // pred_check
        %p383 = pneg %p382
      $region46: #{tpu_custom_call.1} parent=5 // pred_check_branch
        %385 = sbr.rel (%p383) target = $region48
      $region47: #{tpu_custom_call.1} parent=5 // pred_region
        // Predicated region
        $region49: #{tpu_custom_call.1} parent=47 // pred_check
          %p386 = pneg %p45
        $region50: #{tpu_custom_call.1} parent=47 // pred_check_branch
          %388 = sbr.rel (%p386) target = $region52
        $region51: #{tpu_custom_call.1} parent=47 // pred_region
          %p389 = scmp.lt.s32.totalorder %s25, 3
          %s390 = scalar_select %p389, %s25, 3
          %s391 = smul.addr %s390, 2
          %s392 = smul.addr %s391, 4
          %s393 = scalar_lea.vmem %s0, %s392
        $region52: #{tpu_custom_call.1} parent=47 // pred_fallthru
          _
        // Predicated region
        $region53: #{tpu_custom_call.1} parent=47 // pred_check
          %p394 = pneg %p71
        $region54: #{tpu_custom_call.1} parent=47 // pred_check_branch
          %396 = sbr.rel (%p394) target = $region56
        $region55: #{tpu_custom_call.1} parent=47 // pred_region
          %s397 = sand.u32 %s61, 1
          %s398 = scalar_lea.sflag [#allocation3], %s397
          %s399 = sand.u32 %s61, 1
          %s400 = smul.addr %s399, 8
          %s401 = scalar_lea.vmem [#allocation2], %s400
          %403 = vsyncadd %s398, 0
          %s404 = smul.addr %s25, 2
          %s405 = smul.addr %s404, 4
          %s406 = scalar_lea.hbm %s1, %s405
          %s407 = sshll.u32 %s406, 4
          %s408 = int_to_ptr.hbm [resolvable:$true] %s407
          %s409 = sshll.u32 %s401, 4
          %s410 = int_to_ptr.vmem [resolvable:$true] %s409
          %415 = dma.hbm_to_vmem [thread:$0]  %s408, 128, %s410, %s398, 64, 64, 4
        $region56: #{tpu_custom_call.1} parent=47 // pred_fallthru
          _
        // Predicated region
        $region57: #{tpu_custom_call.1} parent=47 // pred_check
          %p416 = pneg %p97
        $region58: #{tpu_custom_call.1} parent=47 // pred_check_branch
          %418 = sbr.rel (%p416) target = $region60
        $region59: #{tpu_custom_call.1} parent=47 // pred_region
          %p419 = scmp.lt.s32.totalorder %s25, 3
          %s420 = scalar_select %p419, %s25, 3
          %s421 = smul.addr %s420, 2
          %s422 = smul.addr %s421, 4
          %s423 = scalar_lea.vmem %s2, %s422
        $region60: #{tpu_custom_call.1} parent=47 // pred_fallthru
          _
        // Predicated region
        $region61: #{tpu_custom_call.1} parent=47 // pred_check
          %p424 = pneg %p123
        $region62: #{tpu_custom_call.1} parent=47 // pred_check_branch
          %426 = sbr.rel (%p424) target = $region64
        $region63: #{tpu_custom_call.1} parent=47 // pred_region
          %s427 = sand.u32 %s25, 1
          %s428 = scalar_lea.sflag [#allocation5], %s427
          %s429 = sand.u32 %s113, 1
          %s430 = scalar_lea.vmem [#allocation4], %s429
          %432 = vsyncadd %s428, 0
          %s433 = scalar_lea.hbm %s3, %s25
          %s435 = sshll.u32 %s433, 4
          %s436 = int_to_ptr.hbm [resolvable:$true] %s435
          %s437 = sshll.u32 %s430, 4
          %s438 = int_to_ptr.vmem [resolvable:$true] %s437
          %440 = dma.hbm_to_vmem [thread:$0]  %s436, 16, %s438, %s428
        $region64: #{tpu_custom_call.1} parent=47 // pred_fallthru
          _
      $region48: #{tpu_custom_call.1} parent=5 // pred_fallthru
        _
      %p441 = scmp.le.s32.totalorder 1, %s25
      %p442 = scmp.lt.s32.totalorder %s25, 5
      %p443 = pnand %p441, %p442
      %p444 = pneg %p443
      // Predicated region
      $region65: #{tpu_custom_call.1} parent=5 // pred_check
        _
      $region66: #{tpu_custom_call.1} parent=5 // pred_check_branch
        %446 = sbr.rel (%p443) target = $region68
      $region67: #{tpu_custom_call.1} parent=5 // pred_region
        %s447 = ssub.s32 %s25, 1
        %s448 = sand.u32 %s64, 1
        %s449 = scalar_lea.sflag [#allocation3], %s448
        %s450 = sand.u32 %s64, 1
        %s451 = smul.addr %s450, 8
        %s452 = scalar_lea.vmem [#allocation2], %s451
        // Predicated region
        $region69: #{tpu_custom_call.1} parent=67 // pred_check
          %p453 = pneg %p77
        $region70: #{tpu_custom_call.1} parent=67 // pred_check_branch
          %455 = sbr.rel (%p453) target = $region72
        $region71: #{tpu_custom_call.1} parent=67 // pred_region
          %457 = dma.done %s449, 128
        $region72: #{tpu_custom_call.1} parent=67 // pred_fallthru
          _
        %s458 = sand.u32 %s30, 1
        %s459 = scalar_lea.sflag [#allocation5], %s458
        %s460 = sand.u32 %s116, 1
        %s461 = scalar_lea.vmem [#allocation4], %s460
        // Predicated region
        $region73: #{tpu_custom_call.1} parent=67 // pred_check
          %p462 = pneg %p129
        $region74: #{tpu_custom_call.1} parent=67 // pred_check_branch
          %464 = sbr.rel (%p462) target = $region76
        $region75: #{tpu_custom_call.1} parent=67 // pred_region
          %466 = dma.done %s459, 16
        $region76: #{tpu_custom_call.1} parent=67 // pred_fallthru
          _
        // Predicated region
        $region77: #{tpu_custom_call.1} parent=67 // pred_check
          %p467 = pneg %p150
        $region78: #{tpu_custom_call.1} parent=67 // pred_check_branch
          %469 = sbr.rel (%p467) target = $region80
        $region79: #{tpu_custom_call.1} parent=67 // pred_region
          %471 = dma.done [#allocation5], 64
        $region80: #{tpu_custom_call.1} parent=67 // pred_fallthru
          _
        // Predicated region
        $region81: #{tpu_custom_call.1} parent=67 // pred_check
          %p472 = pneg %p234
        $region82: #{tpu_custom_call.1} parent=67 // pred_check_branch
          %474 = sbr.rel (%p472) target = $region84
        $region83: #{tpu_custom_call.1} parent=67 // pred_region
          %476 = dma.done [#allocation8], 256
        $region84: #{tpu_custom_call.1} parent=67 // pred_fallthru
          _
        %p477 = scmp.lt.s32.totalorder %s30, 3
        %s478 = scalar_select %p477, %s30, 3
        %s479 = smul.addr %s478, 2
        %s480 = smul.addr %s479, 4
        %s481 = scalar_lea.vmem %s0, %s480
        %p482 = pneg %p51
        %p483 = pneg %p48
        %s484 = sand.u32 %s64, 1
        %s485 = scalar_lea.sflag [#allocation3], %s484
        %s486 = sand.u32 %s64, 1
        %s487 = smul.addr %s486, 8
        %s488 = scalar_lea.vmem [#allocation2], %s487
        %p489 = pneg %p77
        %p490 = pneg %p74
        %p491 = scmp.lt.s32.totalorder %s30, 3
        %s492 = scalar_select %p491, %s30, 3
        %s493 = smul.addr %s492, 2
        %s494 = smul.addr %s493, 4
        %s495 = scalar_lea.vmem %s2, %s494
        %p496 = pneg %p103
        %p497 = pneg %p100
        %s498 = sand.u32 %s30, 1
        %s499 = scalar_lea.sflag [#allocation5], %s498
        %s500 = sand.u32 %s116, 1
        %s501 = scalar_lea.vmem [#allocation4], %s500
        %p502 = pneg %p129
        %p503 = pneg %p126
        %p504 = pneg %p150
        %p505 = pneg %p147
        %p506 = pneg %p171
        %p507 = pneg %p168
        %p508 = pneg %p192
        %p509 = pneg %p189
        %p510 = pneg %p213
        %p511 = pneg %p210
        %p512 = pneg %p234
        %p513 = pneg %p231
        %p514 = pneg %p255
        %p515 = pneg %p252
        %p516 = pneg %p276
        %p517 = pneg %p273
        %p518 = pneg %p297
        %p519 = pneg %p294
        %p520 = pneg %p323
        %p521 = pneg %p320
        %p522 = scmp.lt.s32.totalorder %s30, 3
        %s523 = scalar_select %p522, %s30, 3
        %s524 = scalar_lea.vmem %s12, %s523
        %p525 = scmp.lt.s32.totalorder %s30, 3
        %s526 = scalar_select %p525, %s30, 3
        %s527 = smul.addr %s526, 2
        %s528 = smul.addr %s527, 4
        %s529 = scalar_lea.vmem %s0, %s528
        %p530 = scmp.lt.s32.totalorder %s30, 3
        %s531 = scalar_select %p530, %s30, 3
        %s532 = smul.addr %s531, 2
        %s533 = smul.addr %s532, 4
        %s534 = scalar_lea.vmem %s2, %s533
        %p535 = scmp.lt.s32.totalorder %s30, 3
        %s536 = scalar_select %p535, %s30, 3
        %s537 = scalar_lea.vmem %s12, %s536
        %v539 = vld [vmem:[%s529] sm:$0xf]
        %v540 = vld [vmem:[%s529 + $0x4] sm:$0xf]
        %v541 = vld [vmem:[%s452] sm:$0xf]
        %v542 = vld [vmem:[%s452 + $0x4] sm:$0xf]
        %v543 = vunpack.c.l.bf16 %v539
        %v544 = vunpack.c.l.bf16 %v540
        %v545 = vunpack.c.l.bf16 %v541
        %v546 = vunpack.c.l.bf16 %v542
        %v547 = vmul.f32 %v543, %v545
        %v548 = vmul.f32 %v544, %v546
        %v549 = vpack.c.bf16 %v548, %v547
        %v550 = vld [vmem:[%s534] sm:$0xf]
        %v551 = vld [vmem:[%s534 + $0x4] sm:$0xf]
        %v554 = vunpack.c.l.b16 %v550
        %v555 = vunpack.c.l.b16 %v551
        %v556 = vpack.c.b16 %v555, %v554
        %vm558 = vcmask 130048
        %v560 = vsel %vm558, %v549, 0
        %562 = vmatpush.bf16.msra.mxu0 0
        %563 = vmatpush.bf16.msra.mxu0 0
        %564 = vmatpush.bf16.msra.mxu0 0
        %565 = vmatpush.bf16.msra.mxu0 0
        %566 = vmatpush.bf16.msra.mxu0 0
        %567 = vmatpush.bf16.msra.mxu0 0
        %568 = vmatpush.bf16.msra.mxu0 0
        %569 = vmatpush.bf16.msra.mxu0 %v556
        %570 = vmatmul.bf16.gmra.mxu0 %v560
        %v571 = vpop.f32.mrf.mxu0
        %v572 = vadd.f32 0.0, %v571
        %v573 = vpop.f32.mrf.mxu0
        %v574 = vadd.f32 0.0, %v573
        %575 = vdwg.mxu0
        %v576 = vpack.c.bf16 %v574, %v572
        %v577 = vld [vmem:[#allocation6] sm:$0xf]
        %v578 = vld [vmem:[%s5] sm:$0x1]
        %v580 = vperm.slane %v578, 0
        %vm582 = vcmask 56320
        %v584 = vsel %vm582, %v576, 0
        %vm586 = vcmask 1042432
        %vm587 = vcmask 1043456
        %v588 = vsel %vm586, 4294967295, 65535
        %v589 = vsel %vm587, %v588, 0
        %v591 = vand.u32 %v577, %v589
        %593 = vmatpush.bf16.msra.mxu0 0
        %594 = vmatpush.bf16.msra.mxu0 0
        %595 = vmatpush.bf16.msra.mxu0 0
        %596 = vmatpush.bf16.msra.mxu0 0
        %597 = vmatpush.bf16.msra.mxu0 0
        %598 = vmatpush.bf16.msra.mxu0 0
        %599 = vmatpush.bf16.msra.mxu0 0
        %600 = vmatpush.bf16.msra.mxu0 %v591
        %601 = vmatmul.bf16.gmra.mxu0 %v584
        %v602 = vpop.f32.mrf.mxu0
        %v603 = vadd.f32 %v580, %v602
        %v604 = vpop.f32.mrf.mxu0
        %v605 = vadd.f32 %v580, %v604
        %606 = vdwg.mxu0
        %v607 = vmax.f32 %v603, 0.0
        %v608 = vmax.f32 %v605, 0.0
        %v609 = vpack.c.bf16 %v608, %v607
        %v610 = vld [vmem:[%s6] sm:$0xf]
        %v611 = vld [vmem:[%s6 + $0x4] sm:$0xf]
        %v612 = vld [vmem:[%s6 + $0x8] sm:$0xf]
        %v613 = vld [vmem:[%s6 + $0xc] sm:$0xf]
        %v618 = vunpack.c.l.b16 %v610
        %v619 = vunpack.c.l.b16 %v611
        %v620 = vunpack.c.l.b16 %v612
        %v621 = vunpack.c.l.b16 %v613
        %v622 = vpack.c.b16 %v619, %v618
        %v623 = vpack.c.b16 %v621, %v620
        %vm626 = vcmask 261120
        %v628 = vsel %vm626, %v609, 0
        %630 = vmatpush.bf16.msra.mxu0 0
        %631 = vmatpush.bf16.msra.mxu0 0
        %632 = vmatpush.bf16.msra.mxu0 0
        %633 = vmatpush.bf16.msra.mxu0 0
        %634 = vmatpush.bf16.msra.mxu0 0
        %635 = vmatpush.bf16.msra.mxu0 0
        %636 = vmatpush.bf16.msra.mxu0 %v623
        %637 = vmatpush.bf16.msra.mxu0 %v622
        %638 = vmatmul.bf16.gmra.mxu0 %v628
        %v639 = vpop.f32.mrf.mxu0
        %v640 = vadd.f32 0.0, %v639
        %v641 = vpop.f32.mrf.mxu0
        %v642 = vadd.f32 0.0, %v641
        %643 = vdwg.mxu0
        %v644 = vpack.c.bf16 %v642, %v640
        %v645 = vld [vmem:[%s7] sm:$0x1]
        %v647 = vperm.slane %v645, 0
        %v651 = vunpack.c.l.b16 %v539
        %v652 = vunpack.c.l.b16 %v540
        %v653 = vpack.c.b16 %v652, %v651
        %v655 = vsel %vm558, %v653, 0
        %657 = vmatpush.bf16.msra.mxu0 0
        %658 = vmatpush.bf16.msra.mxu0 0
        %659 = vmatpush.bf16.msra.mxu0 0
        %660 = vmatpush.bf16.msra.mxu0 0
        %661 = vmatpush.bf16.msra.mxu0 0
        %662 = vmatpush.bf16.msra.mxu0 0
        %663 = vmatpush.bf16.msra.mxu0 0
        %664 = vmatpush.bf16.msra.mxu0 %v644
        %665 = vmatmul.bf16.gmra.mxu0 %v655
        %v666 = vpop.f32.mrf.mxu0
        %v667 = vadd.f32 %v647, %v666
        %v668 = vpop.f32.mrf.mxu0
        %v669 = vadd.f32 %v647, %v668
        %670 = vdwg.mxu0
        %v671 = vmax.f32 %v667, 0.0
        %v672 = vmax.f32 %v669, 0.0
        %v673 = vpack.c.bf16 %v672, %v671
        %v674 = vld [vmem:[#allocation7] sm:$0xf]
        %v675 = vld [vmem:[#allocation7 + $0x4] sm:$0xf]
        %v676 = vld [vmem:[#allocation7 + $0x8] sm:$0xf]
        %v677 = vld [vmem:[#allocation7 + $0xc] sm:$0xf]
        %v682 = vunpack.c.l.b16 %v674
        %v683 = vunpack.c.l.b16 %v675
        %v684 = vunpack.c.l.b16 %v676
        %v685 = vunpack.c.l.b16 %v677
        %v686 = vpack.c.b16 %v683, %v682
        %v687 = vpack.c.b16 %v685, %v684
        %v691 = vsel %vm626, %v673, 0
        %693 = vmatpush.bf16.msra.mxu0 0
        %694 = vmatpush.bf16.msra.mxu0 0
        %695 = vmatpush.bf16.msra.mxu0 0
        %696 = vmatpush.bf16.msra.mxu0 0
        %697 = vmatpush.bf16.msra.mxu0 0
        %698 = vmatpush.bf16.msra.mxu0 0
        %699 = vmatpush.bf16.msra.mxu0 %v687
        %700 = vmatpush.bf16.msra.mxu0 %v686
        %701 = vmatmul.bf16.gmra.mxu0 %v691
        %v702 = vpop.f32.mrf.mxu0
        %v703 = vadd.f32 0.0, %v702
        %v704 = vpop.f32.mrf.mxu0
        %v705 = vadd.f32 0.0, %v704
        %706 = vdwg.mxu0
        %v707 = vpack.c.bf16 %v705, %v703
        %v708 = vld [vmem:[%s9] sm:$0x1]
        %v710 = vperm.slane %v708, 0
        %712 = vmatpush.bf16.msra.mxu0 0
        %713 = vmatpush.bf16.msra.mxu0 0
        %714 = vmatpush.bf16.msra.mxu0 0
        %715 = vmatpush.bf16.msra.mxu0 0
        %716 = vmatpush.bf16.msra.mxu0 0
        %717 = vmatpush.bf16.msra.mxu0 0
        %718 = vmatpush.bf16.msra.mxu0 0
        %719 = vmatpush.bf16.msra.mxu0 %v707
        %720 = vmatmul.bf16.gmra.mxu0 %v655
        %v721 = vpop.f32.mrf.mxu0
        %v722 = vadd.f32 %v710, %v721
        %v723 = vpop.f32.mrf.mxu0
        %v724 = vadd.f32 %v710, %v723
        %725 = vdwg.mxu0
        %v726 = vmax.f32 %v722, 0.0
        %v727 = vmax.f32 %v724, 0.0
        %v728 = vpack.c.bf16 %v727, %v726
        %v729 = vld [vmem:[%s10] sm:$0xf]
        %v730 = vld [vmem:[%s10 + $0x4] sm:$0xf]
        %v731 = vld [vmem:[%s10 + $0x8] sm:$0xf]
        %v732 = vld [vmem:[%s10 + $0xc] sm:$0xf]
        %v737 = vunpack.c.l.b16 %v729
        %v738 = vunpack.c.l.b16 %v730
        %v739 = vunpack.c.l.b16 %v731
        %v740 = vunpack.c.l.b16 %v732
        %v741 = vpack.c.b16 %v738, %v737
        %v742 = vpack.c.b16 %v740, %v739
        %v746 = vsel %vm626, %v728, 0
        %748 = vmatpush.bf16.msra.mxu0 0
        %749 = vmatpush.bf16.msra.mxu0 0
        %750 = vmatpush.bf16.msra.mxu0 0
        %751 = vmatpush.bf16.msra.mxu0 0
        %752 = vmatpush.bf16.msra.mxu0 0
        %753 = vmatpush.bf16.msra.mxu0 0
        %754 = vmatpush.bf16.msra.mxu0 %v742
        %755 = vmatpush.bf16.msra.mxu0 %v741
        %756 = vmatmul.bf16.gmra.mxu0 %v746
        %v757 = vpop.f32.mrf.mxu0
        %v758 = vadd.f32 0.0, %v757
        %v759 = vpop.f32.mrf.mxu0
        %v760 = vadd.f32 0.0, %v759
        %761 = vdwg.mxu0
        %v762 = vpack.c.bf16 %v760, %v758
        %v763 = vld [vmem:[%s11] sm:$0x1]
        %v765 = vperm.slane %v763, 0
        %767 = vmatpush.bf16.msra.mxu0 0
        %768 = vmatpush.bf16.msra.mxu0 0
        %769 = vmatpush.bf16.msra.mxu0 0
        %770 = vmatpush.bf16.msra.mxu0 0
        %771 = vmatpush.bf16.msra.mxu0 0
        %772 = vmatpush.bf16.msra.mxu0 0
        %773 = vmatpush.bf16.msra.mxu0 0
        %774 = vmatpush.bf16.msra.mxu0 %v762
        %775 = vmatmul.bf16.gmra.mxu0 %v655
        %v776 = vpop.f32.mrf.mxu0
        %v777 = vadd.f32 %v765, %v776
        %v778 = vpop.f32.mrf.mxu0
        %v779 = vadd.f32 %v765, %v778
        %780 = vdwg.mxu0
        %v781 = vld [vmem:[%s461] sm:$0x1]
        %v782 = vpack.c.bf16 %v781, %v781
        %v783 = vpack.c.bf16 %v779, %v777
        %v785 = vsel %vm558, %v782, 0
        %787 = vmatpush.bf16.msra.mxu0 0
        %788 = vmatpush.bf16.msra.mxu0 0
        %789 = vmatpush.bf16.msra.mxu0 0
        %790 = vmatpush.bf16.msra.mxu0 0
        %791 = vmatpush.bf16.msra.mxu0 0
        %792 = vmatpush.bf16.msra.mxu0 0
        %793 = vmatpush.bf16.msra.mxu0 0
        %794 = vmatpush.bf16.msra.mxu0 %v783
        %795 = vmatmul.bf16.gmra.mxu0 %v785
        %v796 = vpop.f32.mrf.mxu0
        %v797 = vadd.f32 0.0, %v796
        %v798 = vpop.f32.mrf.mxu0
        %799 = vdwg.mxu0
        %vm800 = vcmask 8192
        %801 = vst.msk [vmem:[%s537] sm:$0x1] %vm800, %v797
        %p802 = scmp.lt.s32.totalorder %s30, 3
        %s803 = scalar_select %p802, %s30, 3
        %s804 = scalar_lea.vmem %s12, %s803
        // Predicated region
        $region85: #{tpu_custom_call.1} parent=67 // pred_check
          %p805 = pneg %p320
        $region86: #{tpu_custom_call.1} parent=67 // pred_check_branch
          %807 = sbr.rel (%p805) target = $region88
        $region87: #{tpu_custom_call.1} parent=67 // pred_region
          _
        $region88: #{tpu_custom_call.1} parent=67 // pred_fallthru
          _
      $region68: #{tpu_custom_call.1} parent=5 // pred_fallthru
        _
      %p808 = scmp.le.s32.totalorder 2, %s25
      // Predicated region
      $region89: #{tpu_custom_call.1} parent=5 // pred_check
        %p809 = pneg %p808
      $region90: #{tpu_custom_call.1} parent=5 // pred_check_branch
        %811 = sbr.rel (%p809) target = $region92
      $region91: #{tpu_custom_call.1} parent=5 // pred_region
        %s812 = ssub.s32 %s25, 2
        // Predicated region
        $region93: #{tpu_custom_call.1} parent=91 // pred_check
          %p813 = pneg %p326
        $region94: #{tpu_custom_call.1} parent=91 // pred_check_branch
          %815 = sbr.rel (%p813) target = $region96
        $region95: #{tpu_custom_call.1} parent=91 // pred_region
          %p816 = scmp.lt.s32.totalorder %s31, 3
          %s817 = scalar_select %p816, %s31, 3
          %s818 = scalar_lea.vmem %s12, %s817
        $region96: #{tpu_custom_call.1} parent=91 // pred_fallthru
          _
      $region92: #{tpu_custom_call.1} parent=5 // pred_fallthru
        _
    $region6: #{tpu_custom_call.1} parent=1 // loop_footer
      %s29 = sadd.s32 1, %s25
    $region7: #{tpu_custom_call.1} parent=1 // loop_footer_branch
      %24 = sbr.rel target = $region3
    $region8: #{tpu_custom_call.1} parent=1 // loop_exit
      _
    %819 = vsyncpa [#allocation3], 1
    %s820 = scalar_lea.sflag [#allocation3], 1
    %821 = vsyncpa %s820, 1
    %822 = vsyncpa [#allocation5], 1
    %s823 = scalar_lea.sflag [#allocation5], 1
    %824 = vsyncpa %s823, 1
    %825 = vsyncpa [#allocation8], 1

</llo_original>
